<compile_context>
chip_gen: v7x
topology: tpu7x:2x2x1
jax: 0.10.0
libtpu: 0.0.40
codegen_flags: <defaults>
</compile_context>

<pallas_src>
import numpy as np
import jax
import jax.numpy as jnp
from jax import lax
from jax.experimental import pallas as pl
from jax.experimental.pallas import tpu as pltpu

_VMEM = pl.BlockSpec(memory_space=pltpu.MemorySpace.VMEM)
_LANE = 128


# ------------------------------ Pallas kernel -------------------------------

def _sage_layer_merged(a, h, w_cat, b):
    """One SAGEConv('mean') layer with pre-concatenated weights.

    w_cat = [W_self | W_neigh]  (in_f, 2*out_f).  Single projection matmul,
    then project-then-aggregate for the neighbour half:
        h @ Ws + A @ (h @ Wn) + b   ==   h @ Ws + (A @ h) @ Wn + b
    """
    out_f = w_cat.shape[1] // 2
    proj = jnp.dot(h, w_cat, preferred_element_type=jnp.float32)   # (N, 2*out_f)
    neigh = jnp.dot(a, proj[:, out_f:], preferred_element_type=jnp.float32)
    return proj[:, :out_f] + neigh + b


def _fused_kernel(a_ref, x_ref, w1_ref, b1_ref, w2_ref, b2_ref, idx_ref,
                  score_ref):
    a = a_ref[...]
    x = x_ref[...]
    # SAGEConv layer 1 (mean aggregator) + ReLU
    h1 = jnp.maximum(_sage_layer_merged(a, x, w1_ref[...], b1_ref[...]), 0.0)
    # SAGEConv layer 2 (mean aggregator)
    h2 = _sage_layer_merged(a, h1, w2_ref[...], b2_ref[...])

    # Dot-product edge predictor on the fused pos+neg edge list, via a shared
    # Gram matrix.  idx = int32 (2, E_all): row0 = u, row1 = v.
    idx = idx_ref[...]
    n = h2.shape[0]
    e_all = idx.shape[1]
    u = idx[0:1, :]                                          # (1, E_all)
    v = idx[1:2, :]
    iota_n = lax.broadcasted_iota(jnp.int32, (n, e_all), 0)
    sel_u = (iota_n == u).astype(jnp.float32)                # (N, E_all) one-hot cols
    sel_v = (iota_n == v).astype(jnp.float32)
    # S[i, j] = <h2[i], h2[j]>  — computed once, reused for both edge sets.
    dn = (((1,), (1,)), ((), ()))
    gram = lax.dot_general(h2, h2, dn, preferred_element_type=jnp.float32)
    sv = jnp.dot(gram, sel_v, preferred_element_type=jnp.float32)   # S[:, v[e]]
    # score[e] = S[u[e], v[e]]
    score_ref[...] = jnp.sum(sel_u * sv, axis=0, keepdims=True)     # (1, E_all)


# ------------------------------ wrapper --------------------------------------

def make_model_forward(n_pos, e_pos_pad, n_neg):
    """Model.forward(g, neg_g, x) -> (pos_score, neg_score), each (E, 1).

    Padded edge lanes (idx = (0, 0)) produce real node-0 self-scores; they are
    sliced off inside the same jit, so they never escape.
    """
    @jax.jit
    def forward(params, a, edge_idx, x):
        e_all = edge_idx.shape[1]
        scores = pl.pallas_call(
            _fused_kernel,
            out_shape=jax.ShapeDtypeStruct((1, e_all), jnp.float32),
            in_specs=[_VMEM] * 7,
            out_specs=_VMEM,
        )(a, x, *params, edge_idx)
        pos = scores[0, :n_pos].reshape(n_pos, 1)
        neg = scores[0, e_pos_pad:e_pos_pad + n_neg].reshape(n_neg, 1)
        return pos, neg

    return forward


# ------------------------------ graph / param setup --------------------------

def build_norm_adj(u, v, n):
    a = np.zeros((n, n), np.float32)
    for s, d in zip(u, v):
        a[d, s] += 1.0
    deg = a.sum(axis=1, keepdims=True)
    a = a / np.maximum(deg, 1.0)  # zero rows (no in-edges) stay zero, like DGL
    return jnp.asarray(a)


def pack_edge_idx_fused(u_pos, v_pos, u_neg, v_neg):
    """Pack both edge sets into one int32 (2, E_pos_pad + E_neg_pad) array.

    Each set is padded to a multiple of 128 lanes so the split point is
    lane-aligned and the kernel emits a single lane-dense score row."""
    def pad(u, v):
        e = len(u)
        e_pad = -(-e // _LANE) * _LANE
        arr = np.zeros((2, e_pad), np.int32)
        arr[0, :e] = u
        arr[1, :e] = v
        return arr, e, e_pad

    p, n_pos, e_pos_pad = pad(u_pos, v_pos)
    q, n_neg, _ = pad(u_neg, v_neg)
    return jnp.asarray(np.concatenate([p, q], axis=1)), n_pos, e_pos_pad, n_neg


if __name__ == "__main__":
    N = 16            # number of nodes
    IN, HID, OUT = 8, 32, 16
    E = 32            # positive edges
    E_NEG = 32        # negative edges

    rng = np.random.RandomState(0)
    # positive graph g: a ring plus random extra edges
    u_ring = np.arange(N)
    v_ring = (u_ring + 1) % N
    u_extra = rng.randint(0, N, size=E - N)
    v_extra = rng.randint(0, N, size=E - N)
    u_pos = np.concatenate([u_ring, u_extra])
    v_pos = np.concatenate([v_ring, v_extra])
    # negative graph neg_g: random edges over the same node set
    u_neg = rng.randint(0, N, size=E_NEG)
    v_neg = rng.randint(0, N, size=E_NEG)

    a_pos = build_norm_adj(u_pos, v_pos, N)
    edge_idx, n_pos, e_pos_pad, n_neg = pack_edge_idx_fused(
        u_pos, v_pos, u_neg, v_neg)

    # deterministic parameter init (Xavier-ish)
    key = jax.random.PRNGKey(0)
    k = jax.random.split(key, 7)
    ws1 = jax.random.normal(k[0], (IN, HID), jnp.float32) / np.sqrt(IN)
    wn1 = jax.random.normal(k[1], (IN, HID), jnp.float32) / np.sqrt(IN)
    b1 = jnp.zeros((1, HID), jnp.float32)
    ws2 = jax.random.normal(k[2], (HID, OUT), jnp.float32) / np.sqrt(HID)
    wn2 = jax.random.normal(k[3], (HID, OUT), jnp.float32) / np.sqrt(HID)
    b2 = jnp.zeros((1, OUT), jnp.float32)

    # host-side weight concatenation: [W_self | W_neigh] per layer
    w1_cat = jnp.concatenate([ws1, wn1], axis=1)   # (IN, 2*HID)
    w2_cat = jnp.concatenate([ws2, wn2], axis=1)   # (HID, 2*OUT)
    params = (w1_cat, b1, w2_cat, b2)

    x = jax.random.normal(k[4], (N, IN), jnp.float32)

    model_forward = make_model_forward(n_pos, e_pos_pad, n_neg)
    pos_score, neg_score = model_forward(params, a_pos, edge_idx, x)
    pos_score = jax.block_until_ready(pos_score)
    neg_score = jax.block_until_ready(neg_score)

    # pure-JAX reference check (standard SAGE ordering)
    def ref_sage(a, xx):
        h1 = jnp.maximum(xx @ ws1 + (a @ xx) @ wn1 + b1, 0.0)
        return h1 @ ws2 + (a @ h1) @ wn2 + b2

    h_ref = ref_sage(a_pos, x)
    pos_ref = jnp.sum(h_ref[np.asarray(u_pos)] * h_ref[np.asarray(v_pos)],
                      axis=-1, keepdims=True)
    neg_ref = jnp.sum(h_ref[np.asarray(u_neg)] * h_ref[np.asarray(v_neg)],
                      axis=-1, keepdims=True)

    assert pos_score.shape == (E, 1) and neg_score.shape == (E_NEG, 1)
    np.testing.assert_allclose(np.asarray(pos_score), np.asarray(pos_ref),
                               rtol=1e-4, atol=1e-4)
    np.testing.assert_allclose(np.asarray(neg_score), np.asarray(neg_ref),
                               rtol=1e-4, atol=1e-4)
    print("KERNEL_OK")
</pallas_src>

<mosaic_0001>
module attributes {stable_mosaic.version = 11 : i64} {
  func.func @_fused_kernel(%arg0: memref<16x16xf32, #tpu.memory_space<vmem>>, %arg1: memref<16x8xf32, #tpu.memory_space<vmem>>, %arg2: memref<8x64xf32, #tpu.memory_space<vmem>>, %arg3: memref<1x32xf32, #tpu.memory_space<vmem>>, %arg4: memref<32x32xf32, #tpu.memory_space<vmem>>, %arg5: memref<1x16xf32, #tpu.memory_space<vmem>>, %arg6: memref<2x256xi32, #tpu.memory_space<vmem>>, %arg7: memref<1x256xf32, #tpu.memory_space<vmem>>) attributes {dimension_semantics = [], scalar_prefetch = 0 : i64, scratch_operands = 0 : i64, tpu.core_type = #tpu.core_type<tc>} {
    %c0 = arith.constant 0 : index
    %c0_0 = arith.constant 0 : index
    %0 = vector.load %arg0[%c0, %c0_0] : memref<16x16xf32, #tpu.memory_space<vmem>>, vector<16x16xf32>
    %c0_1 = arith.constant 0 : index
    %c0_2 = arith.constant 0 : index
    %1 = vector.load %arg1[%c0_1, %c0_2] : memref<16x8xf32, #tpu.memory_space<vmem>>, vector<16x8xf32>
    %c0_3 = arith.constant 0 : index
    %c0_4 = arith.constant 0 : index
    %2 = vector.load %arg2[%c0_3, %c0_4] : memref<8x64xf32, #tpu.memory_space<vmem>>, vector<8x64xf32>
    %c0_5 = arith.constant 0 : index
    %c0_6 = arith.constant 0 : index
    %3 = vector.load %arg3[%c0_5, %c0_6] : memref<1x32xf32, #tpu.memory_space<vmem>>, vector<1x32xf32>
    %cst = arith.constant dense<0.000000e+00> : vector<16x64xf32>
    %4 = tpu.matmul %1, %2, %cst {dimension_numbers = #tpu.dot_dimension_numbers<[1], [0], [0], [1], [0, 0, 1, 1], [], []>} : vector<16x8xf32>, vector<8x64xf32>, vector<16x64xf32> -> vector<16x64xf32>
    %5 = vector.extract_strided_slice %4 {offsets = [0, 32], sizes = [16, 32], strides = [1, 1]} : vector<16x64xf32> to vector<16x32xf32>
    %cst_7 = arith.constant dense<0.000000e+00> : vector<16x32xf32>
    %6 = tpu.matmul %0, %5, %cst_7 {dimension_numbers = #tpu.dot_dimension_numbers<[1], [0], [0], [1], [0, 0, 1, 1], [], []>} : vector<16x16xf32>, vector<16x32xf32>, vector<16x32xf32> -> vector<16x32xf32>
    %7 = vector.extract_strided_slice %4 {offsets = [0, 0], sizes = [16, 32], strides = [1, 1]} : vector<16x64xf32> to vector<16x32xf32>
    %8 = arith.addf %7, %6 : vector<16x32xf32>
    %9 = vector.broadcast %3 : vector<1x32xf32> to vector<16x32xf32>
    %10 = arith.addf %8, %9 : vector<16x32xf32>
    %cst_8 = arith.constant 0.000000e+00 : f32
    %11 = vector.broadcast %cst_8 : f32 to vector<16x32xf32>
    %12 = arith.maximumf %10, %11 : vector<16x32xf32>
    %c0_9 = arith.constant 0 : index
    %c0_10 = arith.constant 0 : index
    %13 = vector.load %arg4[%c0_9, %c0_10] : memref<32x32xf32, #tpu.memory_space<vmem>>, vector<32x32xf32>
    %c0_11 = arith.constant 0 : index
    %c0_12 = arith.constant 0 : index
    %14 = vector.load %arg5[%c0_11, %c0_12] : memref<1x16xf32, #tpu.memory_space<vmem>>, vector<1x16xf32>
    %cst_13 = arith.constant dense<0.000000e+00> : vector<16x32xf32>
    %15 = tpu.matmul %12, %13, %cst_13 {dimension_numbers = #tpu.dot_dimension_numbers<[1], [0], [0], [1], [0, 0, 1, 1], [], []>} : vector<16x32xf32>, vector<32x32xf32>, vector<16x32xf32> -> vector<16x32xf32>
    %16 = vector.extract_strided_slice %15 {offsets = [0, 16], sizes = [16, 16], strides = [1, 1]} : vector<16x32xf32> to vector<16x16xf32>
    %cst_14 = arith.constant dense<0.000000e+00> : vector<16x16xf32>
    %17 = tpu.matmul %0, %16, %cst_14 {dimension_numbers = #tpu.dot_dimension_numbers<[1], [0], [0], [1], [0, 0, 1, 1], [], []>} : vector<16x16xf32>, vector<16x16xf32>, vector<16x16xf32> -> vector<16x16xf32>
    %18 = vector.extract_strided_slice %15 {offsets = [0, 0], sizes = [16, 16], strides = [1, 1]} : vector<16x32xf32> to vector<16x16xf32>
    %19 = arith.addf %18, %17 : vector<16x16xf32>
    %20 = vector.broadcast %14 : vector<1x16xf32> to vector<16x16xf32>
    %21 = arith.addf %19, %20 : vector<16x16xf32>
    %c0_15 = arith.constant 0 : index
    %c0_16 = arith.constant 0 : index
    %22 = vector.load %arg6[%c0_15, %c0_16] : memref<2x256xi32, #tpu.memory_space<vmem>>, vector<2x256xi32>
    %23 = vector.extract_strided_slice %22 {offsets = [0, 0], sizes = [1, 256], strides = [1, 1]} : vector<2x256xi32> to vector<1x256xi32>
    %24 = vector.extract_strided_slice %22 {offsets = [1, 0], sizes = [1, 256], strides = [1, 1]} : vector<2x256xi32> to vector<1x256xi32>
    %25 = tpu.iota {dimensions = array<i32: 0>} : vector<16x256xi32>
    %26 = vector.broadcast %23 : vector<1x256xi32> to vector<16x256xi32>
    %27 = arith.cmpi eq, %25, %26 : vector<16x256xi32>
    %28 = arith.extui %27 : vector<16x256xi1> to vector<16x256xi32>
    %29 = arith.sitofp %28 : vector<16x256xi32> to vector<16x256xf32>
    %30 = vector.broadcast %24 : vector<1x256xi32> to vector<16x256xi32>
    %31 = arith.cmpi eq, %25, %30 : vector<16x256xi32>
    %32 = arith.extui %31 : vector<16x256xi1> to vector<16x256xi32>
    %33 = arith.sitofp %32 : vector<16x256xi32> to vector<16x256xf32>
    %cst_17 = arith.constant dense<0.000000e+00> : vector<16x16xf32>
    %34 = tpu.matmul %21, %21, %cst_17 {dimension_numbers = #tpu.dot_dimension_numbers<[1], [1], [0], [0], [0, 0, 1, 0], [], []>} : vector<16x16xf32>, vector<16x16xf32>, vector<16x16xf32> -> vector<16x16xf32>
    %cst_18 = arith.constant dense<0.000000e+00> : vector<16x256xf32>
    %35 = tpu.matmul %34, %33, %cst_18 {dimension_numbers = #tpu.dot_dimension_numbers<[1], [0], [0], [1], [0, 0, 1, 1], [], []>} : vector<16x16xf32>, vector<16x256xf32>, vector<16x256xf32> -> vector<16x256xf32>
    %36 = arith.mulf %29, %35 : vector<16x256xf32>
    %cst_19 = arith.constant dense<0.000000e+00> : vector<256xf32>
    %37 = vector.multi_reduction <add>, %36, %cst_19 [0] : vector<16x256xf32> to vector<256xf32>
    %38 = vector.shape_cast %37 : vector<256xf32> to vector<1x256xf32>
    %c0_20 = arith.constant 0 : index
    %c0_21 = arith.constant 0 : index
    %39 = vector.load %arg7[%c0_20, %c0_21] : memref<1x256xf32, #tpu.memory_space<vmem>>, vector<1x256xf32>
    tpu.vector_store %arg7[%c0_20, %c0_21], %38 {strides = array<i32>} : memref<1x256xf32, #tpu.memory_space<vmem>>, vector<1x256xf32>,
    return
  }
}

</mosaic_0001>

<llo_original>
// kernel: forward.1
$region0: #{forward.1}
  #allocation0 [shape = 'u32[]', space=smem, size = 0x4, offset = 0x4, fixed_abs, tag = 'smem constant byte address 0x4 - core index']
  #allocation1 [shape = 'u32[144,128]{1,0:T(1,128)}', space=vmem, size = 0x12000, scoped, tag = 'internal scratch']
  %s0 = inlined_call_operand.vmem [shape: f32[16,16], index: 0, kind: input, shape index: {}]
  %s1 = inlined_call_operand.vmem [shape: f32[16,8], index: 1, kind: input, shape index: {}]
  %s2 = inlined_call_operand.vmem [shape: f32[8,64], index: 2, kind: input, shape index: {}]
  %s3 = inlined_call_operand.vmem [shape: f32[1,32], index: 3, kind: input, shape index: {}]
  %s4 = inlined_call_operand.hbm [shape: f32[32,32], index: 4, kind: input, shape index: {}]
  %s5 = inlined_call_operand.vmem [shape: f32[1,16], index: 5, kind: input, shape index: {}]
  %s6 = inlined_call_operand.vmem [shape: s32[2,256], index: 6, kind: input, shape index: {}]
  %s7 = inlined_call_operand.vmem [shape: f32[1,256], index: 7, kind: output, shape index: {}]
  %s8 = sld [smem:[#allocation0]]
  $region42: #{forward.1} parent=0
    _
  %s10 = ssub.s32 1, %s8
  %s11 = scalar_select 0, %s10, %s8
  $region1: #{forward.1} parent=0
    #allocation2 [shape = 'u8[16384]{0}', space=vmem, size = 0x4000, scoped, tag = 'input window, operand 4, single buffered']
    #allocation3 [shape = 's32[1]{0}', space=sflag, size = 0x4, scoped, tag = 'scoped memory for forward.1']
    %12 = vsyncpa [#allocation3], 0
    // Predicated region
    $region2: #{forward.1} parent=1 // pred_check
      _
    $region3: #{forward.1} parent=1 // pred_check_branch
      %14 = sbr.rel (0) target = $region5
    $region4: #{forward.1} parent=1 // pred_region
      _
    $region5: #{forward.1} parent=1 // pred_fallthru
      _
    // Predicated region
    $region6: #{forward.1} parent=1 // pred_check
      _
    $region7: #{forward.1} parent=1 // pred_check_branch
      %16 = sbr.rel (0) target = $region9
    $region8: #{forward.1} parent=1 // pred_region
      _
    $region9: #{forward.1} parent=1 // pred_fallthru
      _
    // Predicated region
    $region10: #{forward.1} parent=1 // pred_check
      _
    $region11: #{forward.1} parent=1 // pred_check_branch
      %18 = sbr.rel (0) target = $region13
    $region12: #{forward.1} parent=1 // pred_region
      _
    $region13: #{forward.1} parent=1 // pred_fallthru
      _
    // Predicated region
    $region14: #{forward.1} parent=1 // pred_check
      _
    $region15: #{forward.1} parent=1 // pred_check_branch
      %20 = sbr.rel (0) target = $region17
    $region16: #{forward.1} parent=1 // pred_region
      _
    $region17: #{forward.1} parent=1 // pred_fallthru
      _
    // Predicated region
    $region18: #{forward.1} parent=1 // pred_check
      _
    $region19: #{forward.1} parent=1 // pred_check_branch
      %22 = sbr.rel (0) target = $region21
    $region20: #{forward.1} parent=1 // pred_region
      %s24 = ssub.s32 512, 512
      %25 = vsyncadd [#allocation3], %s24
      %s26 = sshll.u32 [#allocation2], 4
      %s27 = int_to_ptr.vmem [resolvable:$true] %s26
      %32 = dma.hbm_to_vmem [thread:$0]  %s4, 512, %s27, [#allocation3], 128, 128, 8
    $region21: #{forward.1} parent=1 // pred_fallthru
      _
    // Predicated region
    $region22: #{forward.1} parent=1 // pred_check
      _
    $region23: #{forward.1} parent=1 // pred_check_branch
      %34 = sbr.rel (0) target = $region25
    $region24: #{forward.1} parent=1 // pred_region
      _
    $region25: #{forward.1} parent=1 // pred_fallthru
      _
    // Predicated region
    $region26: #{forward.1} parent=1 // pred_check
      _
    $region27: #{forward.1} parent=1 // pred_check_branch
      %36 = sbr.rel (0) target = $region29
    $region28: #{forward.1} parent=1 // pred_region
      _
    $region29: #{forward.1} parent=1 // pred_fallthru
      _
    // Predicated region
    $region30: #{forward.1} parent=1 // pred_check
      _
    $region31: #{forward.1} parent=1 // pred_check_branch
      %38 = sbr.rel (0) target = $region33
    $region32: #{forward.1} parent=1 // pred_region
      %39 = dma.done [#allocation3], 512
    $region33: #{forward.1} parent=1 // pred_fallthru
      _
    %v40 = vld [vmem:[%s0] sm:$0xff]
    %v41 = vld [vmem:[%s0 + $0x8] sm:$0xff]
    %v42 = vld [vmem:[%s1] sm:$0xff]
    %v43 = vld [vmem:[%s1 + $0x8] sm:$0xff]
    %v44 = vld [vmem:[%s2] sm:$0xff]
    %v45 = vld [vmem:[%s3] sm:$0x1]
    %vm46 = vcmask 64512
    %v48 = vsel %vm46, %v42, 0
    %v51 = vsel %vm46, %v43, 0
    %53 = vmatprep.subr.mxu0 0.0
    %54 = vmatpush1.msra.mxu0 %v44
    %55 = vmatprep.subr.mxu0 0.0
    %56 = vmatpush1.msra.mxu0 0.0
    %57 = vmatprep.subr.mxu0 0.0
    %58 = vmatpush1.msra.mxu0 0.0
    %59 = vmatprep.subr.mxu0 0.0
    %60 = vmatpush1.msra.mxu0 0.0
    %61 = vmatprep.subr.mxu0 0.0
    %62 = vmatpush1.msra.mxu0 0.0
    %63 = vmatprep.subr.mxu0 0.0
    %64 = vmatpush1.msra.mxu0 0.0
    %65 = vmatprep.subr.mxu0 0.0
    %66 = vmatpush1.msra.mxu0 0.0
    %67 = vmatprep.subr.mxu0 0.0
    %68 = vmatpush1.msra.mxu0 0.0
    %69 = vmatprep.subr.mxu0 0.0
    %70 = vmatpush1.msra.mxu0 0.0
    %71 = vmatprep.subr.mxu0 0.0
    %72 = vmatpush1.msra.mxu0 0.0
    %73 = vmatprep.subr.mxu0 0.0
    %74 = vmatpush1.msra.mxu0 0.0
    %75 = vmatprep.subr.mxu0 0.0
    %76 = vmatpush1.msra.mxu0 0.0
    %77 = vmatprep.subr.mxu0 0.0
    %78 = vmatpush1.msra.mxu0 0.0
    %79 = vmatprep.subr.mxu0 0.0
    %80 = vmatpush1.msra.mxu0 0.0
    %81 = vmatprep.subr.mxu0 0.0
    %82 = vmatpush1.msra.mxu0 0.0
    %83 = vmatprep.subr.mxu0 0.0
    %84 = vmatpush1.msra.mxu0 0.0
    %85 = vmatprep.subr.mxu0 0.0
    %86 = vmatpush1.msra.mxu0 0.0
    %87 = vmatprep.subr.mxu0 0.0
    %88 = vmatpush1.msra.mxu0 0.0
    %89 = vmatprep.subr.mxu0 0.0
    %90 = vmatpush1.msra.mxu0 0.0
    %91 = vmatprep.subr.mxu0 0.0
    %92 = vmatpush1.msra.mxu0 0.0
    %93 = vmatprep.subr.mxu0 0.0
    %94 = vmatpush1.msra.mxu0 0.0
    %95 = vmatprep.subr.mxu0 0.0
    %96 = vmatpush1.msra.mxu0 0.0
    %97 = vmatprep.subr.mxu0 0.0
    %98 = vmatpush1.msra.mxu0 0.0
    %99 = vmatprep.subr.mxu0 0.0
    %100 = vmatpush1.msra.mxu0 0.0
    %101 = vmatprep.subr.mxu0 0.0
    %102 = vmatpush1.msra.mxu0 0.0
    %103 = vmatprep.subr.mxu0 0.0
    %104 = vmatpush1.msra.mxu0 0.0
    %105 = vmatprep.subr.mxu0 0.0
    %106 = vmatpush1.msra.mxu0 0.0
    %107 = vmatprep.subr.mxu0 0.0
    %108 = vmatpush1.msra.mxu0 0.0
    %109 = vmatprep.subr.mxu0 0.0
    %110 = vmatpush1.msra.mxu0 0.0
    %111 = vmatprep.subr.mxu0 0.0
    %112 = vmatpush1.msra.mxu0 0.0
    %113 = vmatprep.subr.mxu0 0.0
    %114 = vmatpush1.msra.mxu0 0.0
    %115 = vmatprep.subr.mxu0 0.0
    %116 = vmatpush1.msra.mxu0 0.0
    %117 = vmatprep.mubr.f32.mxu0 0.0
    %118 = vmatmul.mubr.f32.gmra.mrb[0].mxu0 %v48
    %v119 = vpop.f32.mrb[0].mxu0
    %v120 = vadd.f32 0.0, %v119
    %v121 = vpop.f32.mrb[0].mxu0
    %122 = vmatprep.mubr.f32.mxu0 0.0
    %123 = vmatmul.mubr.f32.gmra.mrb[0].mxu0 %v51
    %v124 = vpop.f32.mrb[0].mxu0
    %v125 = vadd.f32 0.0, %v124
    %v126 = vpop.f32.mrb[0].mxu0
    %127 = vdwg.mxu0
    %130 = vrot.lane.b32.xlu0 %v120, 96
    %v131 = vpop.permute.xlu0 %130
    %132 = vrot.lane.b32.xlu0 %v125, 96
    %v133 = vpop.permute.xlu0 %132
    %vm136 = vcmask 130048
    %v138 = vsel %vm136, %v40, 0
    %v141 = vsel %vm136, %v41, 0
    %143 = vmatprep.subr.mxu0 0.0
    %144 = vmatpush1.msra.mxu0 %v131
    %145 = vmatprep.subr.mxu0 0.0
    %146 = vmatpush1.msra.mxu0 %v133
    %147 = vmatprep.subr.mxu0 0.0
    %148 = vmatpush1.msra.mxu0 0.0
    %149 = vmatprep.subr.mxu0 0.0
    %150 = vmatpush1.msra.mxu0 0.0
    %151 = vmatprep.subr.mxu0 0.0
    %152 = vmatpush1.msra.mxu0 0.0
    %153 = vmatprep.subr.mxu0 0.0
    %154 = vmatpush1.msra.mxu0 0.0
    %155 = vmatprep.subr.mxu0 0.0
    %156 = vmatpush1.msra.mxu0 0.0
    %157 = vmatprep.subr.mxu0 0.0
    %158 = vmatpush1.msra.mxu0 0.0
    %159 = vmatprep.subr.mxu0 0.0
    %160 = vmatpush1.msra.mxu0 0.0
    %161 = vmatprep.subr.mxu0 0.0
    %162 = vmatpush1.msra.mxu0 0.0
    %163 = vmatprep.subr.mxu0 0.0
    %164 = vmatpush1.msra.mxu0 0.0
    %165 = vmatprep.subr.mxu0 0.0
    %166 = vmatpush1.msra.mxu0 0.0
    %167 = vmatprep.subr.mxu0 0.0
    %168 = vmatpush1.msra.mxu0 0.0
    %169 = vmatprep.subr.mxu0 0.0
    %170 = vmatpush1.msra.mxu0 0.0
    %171 = vmatprep.subr.mxu0 0.0
    %172 = vmatpush1.msra.mxu0 0.0
    %173 = vmatprep.subr.mxu0 0.0
    %174 = vmatpush1.msra.mxu0 0.0
    %175 = vmatprep.subr.mxu0 0.0
    %176 = vmatpush1.msra.mxu0 0.0
    %177 = vmatprep.subr.mxu0 0.0
    %178 = vmatpush1.msra.mxu0 0.0
    %179 = vmatprep.subr.mxu0 0.0
    %180 = vmatpush1.msra.mxu0 0.0
    %181 = vmatprep.subr.mxu0 0.0
    %182 = vmatpush1.msra.mxu0 0.0
    %183 = vmatprep.subr.mxu0 0.0
    %184 = vmatpush1.msra.mxu0 0.0
    %185 = vmatprep.subr.mxu0 0.0
    %186 = vmatpush1.msra.mxu0 0.0
    %187 = vmatprep.subr.mxu0 0.0
    %188 = vmatpush1.msra.mxu0 0.0
    %189 = vmatprep.subr.mxu0 0.0
    %190 = vmatpush1.msra.mxu0 0.0
    %191 = vmatprep.subr.mxu0 0.0
    %192 = vmatpush1.msra.mxu0 0.0
    %193 = vmatprep.subr.mxu0 0.0
    %194 = vmatpush1.msra.mxu0 0.0
    %195 = vmatprep.subr.mxu0 0.0
    %196 = vmatpush1.msra.mxu0 0.0
    %197 = vmatprep.subr.mxu0 0.0
    %198 = vmatpush1.msra.mxu0 0.0
    %199 = vmatprep.subr.mxu0 0.0
    %200 = vmatpush1.msra.mxu0 0.0
    %201 = vmatprep.subr.mxu0 0.0
    %202 = vmatpush1.msra.mxu0 0.0
    %203 = vmatprep.subr.mxu0 0.0
    %204 = vmatpush1.msra.mxu0 0.0
    %205 = vmatprep.subr.mxu0 0.0
    %206 = vmatpush1.msra.mxu0 0.0
    %207 = vmatprep.mubr.f32.mxu0 0.0
    %208 = vmatmul.mubr.f32.gmra.mrb[0].mxu0 %v138
    %v209 = vpop.f32.mrb[0].mxu0
    %v210 = vadd.f32 0.0, %v209
    %v211 = vpop.f32.mrb[0].mxu0
    %212 = vmatprep.mubr.f32.mxu0 0.0
    %213 = vmatmul.mubr.f32.gmra.mrb[0].mxu0 %v141
    %v214 = vpop.f32.mrb[0].mxu0
    %v215 = vadd.f32 0.0, %v214
    %v216 = vpop.f32.mrb[0].mxu0
    %217 = vdwg.mxu0
    %v218 = vadd.f32 %v120, %v210
    %v219 = vadd.f32 %v125, %v215
    %v221 = vlaneseq
    %v222 = vshrl.u32 %v221, 7
    %v223 = vsub.s32 0, %v222
    %v224 = vrot.slane %v45, %v223
    %v226 = vadd.f32 %v218, %v224
    %v227 = vadd.f32 %v219, %v224
    %v228 = vmax.f32 %v226, 0.0
    %v229 = vmax.f32 %v227, 0.0
    %v230 = vld [vmem:[#allocation2] sm:$0xff]
    %v231 = vld [vmem:[#allocation2 + $0x8] sm:$0xff]
    %v232 = vld [vmem:[#allocation2 + $0x10] sm:$0xff]
    %v233 = vld [vmem:[#allocation2 + $0x18] sm:$0xff]
    %v234 = vld [vmem:[%s5] sm:$0x1]
    %vm235 = vcmask 261120
    %v237 = vsel %vm235, %v228, 0
    %v240 = vsel %vm235, %v229, 0
    %242 = vmatprep.subr.mxu0 0.0
    %243 = vmatpush1.msra.mxu0 %v230
    %244 = vmatprep.subr.mxu0 0.0
    %245 = vmatpush1.msra.mxu0 %v231
    %246 = vmatprep.subr.mxu0 0.0
    %247 = vmatpush1.msra.mxu0 %v232
    %248 = vmatprep.subr.mxu0 0.0
    %249 = vmatpush1.msra.mxu0 %v233
    %250 = vmatprep.subr.mxu0 0.0
    %251 = vmatpush1.msra.mxu0 0.0
    %252 = vmatprep.subr.mxu0 0.0
    %253 = vmatpush1.msra.mxu0 0.0
    %254 = vmatprep.subr.mxu0 0.0
    %255 = vmatpush1.msra.mxu0 0.0
    %256 = vmatprep.subr.mxu0 0.0
    %257 = vmatpush1.msra.mxu0 0.0
    %258 = vmatprep.subr.mxu0 0.0
    %259 = vmatpush1.msra.mxu0 0.0
    %260 = vmatprep.subr.mxu0 0.0
    %261 = vmatpush1.msra.mxu0 0.0
    %262 = vmatprep.subr.mxu0 0.0
    %263 = vmatpush1.msra.mxu0 0.0
    %264 = vmatprep.subr.mxu0 0.0
    %265 = vmatpush1.msra.mxu0 0.0
    %266 = vmatprep.subr.mxu0 0.0
    %267 = vmatpush1.msra.mxu0 0.0
    %268 = vmatprep.subr.mxu0 0.0
    %269 = vmatpush1.msra.mxu0 0.0
    %270 = vmatprep.subr.mxu0 0.0
    %271 = vmatpush1.msra.mxu0 0.0
    %272 = vmatprep.subr.mxu0 0.0
    %273 = vmatpush1.msra.mxu0 0.0
    %274 = vmatprep.subr.mxu0 0.0
    %275 = vmatpush1.msra.mxu0 0.0
    %276 = vmatprep.subr.mxu0 0.0
    %277 = vmatpush1.msra.mxu0 0.0
    %278 = vmatprep.subr.mxu0 0.0
    %279 = vmatpush1.msra.mxu0 0.0
    %280 = vmatprep.subr.mxu0 0.0
    %281 = vmatpush1.msra.mxu0 0.0
    %282 = vmatprep.subr.mxu0 0.0
    %283 = vmatpush1.msra.mxu0 0.0
    %284 = vmatprep.subr.mxu0 0.0
    %285 = vmatpush1.msra.mxu0 0.0
    %286 = vmatprep.subr.mxu0 0.0
    %287 = vmatpush1.msra.mxu0 0.0
    %288 = vmatprep.subr.mxu0 0.0
    %289 = vmatpush1.msra.mxu0 0.0
    %290 = vmatprep.subr.mxu0 0.0
    %291 = vmatpush1.msra.mxu0 0.0
    %292 = vmatprep.subr.mxu0 0.0
    %293 = vmatpush1.msra.mxu0 0.0
    %294 = vmatprep.subr.mxu0 0.0
    %295 = vmatpush1.msra.mxu0 0.0
    %296 = vmatprep.subr.mxu0 0.0
    %297 = vmatpush1.msra.mxu0 0.0
    %298 = vmatprep.subr.mxu0 0.0
    %299 = vmatpush1.msra.mxu0 0.0
    %300 = vmatprep.subr.mxu0 0.0
    %301 = vmatpush1.msra.mxu0 0.0
    %302 = vmatprep.subr.mxu0 0.0
    %303 = vmatpush1.msra.mxu0 0.0
    %304 = vmatprep.subr.mxu0 0.0
    %305 = vmatpush1.msra.mxu0 0.0
    %306 = vmatprep.mubr.f32.mxu0 0.0
    %307 = vmatmul.mubr.f32.gmra.mrb[0].mxu0 %v237
    %v308 = vpop.f32.mrb[0].mxu0
    %v309 = vadd.f32 0.0, %v308
    %v310 = vpop.f32.mrb[0].mxu0
    %311 = vmatprep.mubr.f32.mxu0 0.0
    %312 = vmatmul.mubr.f32.gmra.mrb[0].mxu0 %v240
    %v313 = vpop.f32.mrb[0].mxu0
    %v314 = vadd.f32 0.0, %v313
    %v315 = vpop.f32.mrb[0].mxu0
    %316 = vdwg.mxu0
    %319 = vrot.lane.b32.xlu0 %v309, 112
    %v320 = vpop.permute.xlu0 %319
    %321 = vrot.lane.b32.xlu0 %v314, 112
    %v322 = vpop.permute.xlu0 %321
    %325 = vmatprep.subr.mxu0 0.0
    %326 = vmatpush1.msra.mxu0 %v320
    %327 = vmatprep.subr.mxu0 0.0
    %328 = vmatpush1.msra.mxu0 %v322
    %329 = vmatprep.subr.mxu0 0.0
    %330 = vmatpush1.msra.mxu0 0.0
    %331 = vmatprep.subr.mxu0 0.0
    %332 = vmatpush1.msra.mxu0 0.0
    %333 = vmatprep.subr.mxu0 0.0
    %334 = vmatpush1.msra.mxu0 0.0
    %335 = vmatprep.subr.mxu0 0.0
    %336 = vmatpush1.msra.mxu0 0.0
    %337 = vmatprep.subr.mxu0 0.0
    %338 = vmatpush1.msra.mxu0 0.0
    %339 = vmatprep.subr.mxu0 0.0
    %340 = vmatpush1.msra.mxu0 0.0
    %341 = vmatprep.subr.mxu0 0.0
    %342 = vmatpush1.msra.mxu0 0.0
    %343 = vmatprep.subr.mxu0 0.0
    %344 = vmatpush1.msra.mxu0 0.0
    %345 = vmatprep.subr.mxu0 0.0
    %346 = vmatpush1.msra.mxu0 0.0
    %347 = vmatprep.subr.mxu0 0.0
    %348 = vmatpush1.msra.mxu0 0.0
    %349 = vmatprep.subr.mxu0 0.0
    %350 = vmatpush1.msra.mxu0 0.0
    %351 = vmatprep.subr.mxu0 0.0
    %352 = vmatpush1.msra.mxu0 0.0
    %353 = vmatprep.subr.mxu0 0.0
    %354 = vmatpush1.msra.mxu0 0.0
    %355 = vmatprep.subr.mxu0 0.0
    %356 = vmatpush1.msra.mxu0 0.0
    %357 = vmatprep.subr.mxu0 0.0
    %358 = vmatpush1.msra.mxu0 0.0
    %359 = vmatprep.subr.mxu0 0.0
    %360 = vmatpush1.msra.mxu0 0.0
    %361 = vmatprep.subr.mxu0 0.0
    %362 = vmatpush1.msra.mxu0 0.0
    %363 = vmatprep.subr.mxu0 0.0
    %364 = vmatpush1.msra.mxu0 0.0
    %365 = vmatprep.subr.mxu0 0.0
    %366 = vmatpush1.msra.mxu0 0.0
    %367 = vmatprep.subr.mxu0 0.0
    %368 = vmatpush1.msra.mxu0 0.0
    %369 = vmatprep.subr.mxu0 0.0
    %370 = vmatpush1.msra.mxu0 0.0
    %371 = vmatprep.subr.mxu0 0.0
    %372 = vmatpush1.msra.mxu0 0.0
    %373 = vmatprep.subr.mxu0 0.0
    %374 = vmatpush1.msra.mxu0 0.0
    %375 = vmatprep.subr.mxu0 0.0
    %376 = vmatpush1.msra.mxu0 0.0
    %377 = vmatprep.subr.mxu0 0.0
    %378 = vmatpush1.msra.mxu0 0.0
    %379 = vmatprep.subr.mxu0 0.0
    %380 = vmatpush1.msra.mxu0 0.0
    %381 = vmatprep.subr.mxu0 0.0
    %382 = vmatpush1.msra.mxu0 0.0
    %383 = vmatprep.subr.mxu0 0.0
    %384 = vmatpush1.msra.mxu0 0.0
    %385 = vmatprep.subr.mxu0 0.0
    %386 = vmatpush1.msra.mxu0 0.0
    %387 = vmatprep.subr.mxu0 0.0
    %388 = vmatpush1.msra.mxu0 0.0
    %389 = vmatprep.mubr.f32.mxu0 0.0
    %390 = vmatmul.mubr.f32.gmra.mrb[0].mxu0 %v138
    %v391 = vpop.f32.mrb[0].mxu0
    %v392 = vadd.f32 0.0, %v391
    %v393 = vpop.f32.mrb[0].mxu0
    %394 = vmatprep.mubr.f32.mxu0 0.0
    %395 = vmatmul.mubr.f32.gmra.mrb[0].mxu0 %v141
    %v396 = vpop.f32.mrb[0].mxu0
    %v397 = vadd.f32 0.0, %v396
    %v398 = vpop.f32.mrb[0].mxu0
    %399 = vdwg.mxu0
    %v400 = vadd.f32 %v309, %v392
    %v401 = vadd.f32 %v314, %v397
    %v403 = vlaneseq
    %v404 = vshrl.u32 %v403, 7
    %v405 = vsub.s32 0, %v404
    %v406 = vrot.slane %v234, %v405
    %v408 = vadd.f32 %v400, %v406
    %v409 = vadd.f32 %v401, %v406
    %v410 = vld [vmem:[%s6] sm:$0xf]
    %v411 = vlaneseq
    %v412 = vshrl.u32 %v411, 7
    %v413 = vadd.s32 %v412, 8
    %v414 = vlaneseq
    %v415 = vshrl.u32 %v414, 7
    %v416 = vsub.s32 0, %v415
    %v417 = vrot.slane %v410, %v416
    %v418 = vlaneseq
    %v419 = vshrl.u32 %v418, 7
    %v420 = vsub.s32 2, %v419
    %v421 = vrot.slane %v410, %v420
    %v422 = vlaneseq
    %v423 = vshrl.u32 %v422, 7
    %v424 = vsub.s32 0, %v423
    %v425 = vrot.slane %v417, %v424
    %v426 = vlaneseq
    %v427 = vshrl.u32 %v426, 7
    %v428 = vsub.s32 0, %v427
    %v429 = vrot.slane %v421, %v428
    %vm430 = vcmp.eq.s32.totalorder %v412, %v425
    %vm431 = vcmp.eq.s32.totalorder %v412, %v429
    %vm432 = vcmp.eq.s32.totalorder %v413, %v425
    %vm433 = vcmp.eq.s32.totalorder %v413, %v429
    %v434 = vsel %vm430, 1, 0
    %v435 = vsel %vm431, 1, 0
    %v436 = vsel %vm432, 1, 0
    %v437 = vsel %vm433, 1, 0
    %v438 = vcvt.s32.f32 %v434
    %v439 = vcvt.s32.f32 %v435
    %v440 = vcvt.s32.f32 %v436
    %v441 = vcvt.s32.f32 %v437
    %v442 = vlaneseq
    %v443 = vshrl.u32 %v442, 7
    %v444 = vsub.s32 1, %v443
    %v445 = vrot.slane %v410, %v444
    %v446 = vlaneseq
    %v447 = vshrl.u32 %v446, 7
    %v448 = vsub.s32 3, %v447
    %v449 = vrot.slane %v410, %v448
    %v450 = vlaneseq
    %v451 = vshrl.u32 %v450, 7
    %v452 = vsub.s32 1, %v451
    %v453 = vrot.slane %v445, %v452
    %v454 = vlaneseq
    %v455 = vshrl.u32 %v454, 7
    %v456 = vsub.s32 1, %v455
    %v457 = vrot.slane %v449, %v456
    %vm458 = vcmp.eq.s32.totalorder %v412, %v453
    %vm459 = vcmp.eq.s32.totalorder %v412, %v457
    %vm460 = vcmp.eq.s32.totalorder %v413, %v453
    %vm461 = vcmp.eq.s32.totalorder %v413, %v457
    %v462 = vsel %vm458, 1, 0
    %v463 = vsel %vm459, 1, 0
    %v464 = vsel %vm460, 1, 0
    %v465 = vsel %vm461, 1, 0
    %v466 = vcvt.s32.f32 %v462
    %v467 = vcvt.s32.f32 %v463
    %v468 = vcvt.s32.f32 %v464
    %v469 = vcvt.s32.f32 %v465
    %v471 = vsel %vm136, %v408, 0
    %v474 = vsel %vm136, %v409, 0
    %476 = vmatprep.subr.mxu0 0.0
    %477 = vmatpush1.xpose.msra.mxu0 %v471
    %478 = vmatprep.subr.mxu0 0.0
    %479 = vmatpush1.xpose.msra.mxu0 %v474
    %480 = vmatprep.subr.mxu0 0.0
    %481 = vmatpush1.xpose.msra.mxu0 0.0
    %482 = vmatprep.subr.mxu0 0.0
    %483 = vmatpush1.xpose.msra.mxu0 0.0
    %484 = vmatprep.subr.mxu0 0.0
    %485 = vmatpush1.xpose.msra.mxu0 0.0
    %486 = vmatprep.subr.mxu0 0.0
    %487 = vmatpush1.xpose.msra.mxu0 0.0
    %488 = vmatprep.subr.mxu0 0.0
    %489 = vmatpush1.xpose.msra.mxu0 0.0
    %490 = vmatprep.subr.mxu0 0.0
    %491 = vmatpush1.xpose.msra.mxu0 0.0
    %492 = vmatprep.subr.mxu0 0.0
    %493 = vmatpush1.xpose.msra.mxu0 0.0
    %494 = vmatprep.subr.mxu0 0.0
    %495 = vmatpush1.xpose.msra.mxu0 0.0
    %496 = vmatprep.subr.mxu0 0.0
    %497 = vmatpush1.xpose.msra.mxu0 0.0
    %498 = vmatprep.subr.mxu0 0.0
    %499 = vmatpush1.xpose.msra.mxu0 0.0
    %500 = vmatprep.subr.mxu0 0.0
    %501 = vmatpush1.xpose.msra.mxu0 0.0
    %502 = vmatprep.subr.mxu0 0.0
    %503 = vmatpush1.xpose.msra.mxu0 0.0
    %504 = vmatprep.subr.mxu0 0.0
    %505 = vmatpush1.xpose.msra.mxu0 0.0
    %506 = vmatprep.subr.mxu0 0.0
    %507 = vmatpush1.xpose.msra.mxu0 0.0
    %508 = vmatprep.subr.mxu0 0.0
    %509 = vmatpush1.xpose.msra.mxu0 0.0
    %510 = vmatprep.subr.mxu0 0.0
    %511 = vmatpush1.xpose.msra.mxu0 0.0
    %512 = vmatprep.subr.mxu0 0.0
    %513 = vmatpush1.xpose.msra.mxu0 0.0
    %514 = vmatprep.subr.mxu0 0.0
    %515 = vmatpush1.xpose.msra.mxu0 0.0
    %516 = vmatprep.subr.mxu0 0.0
    %517 = vmatpush1.xpose.msra.mxu0 0.0
    %518 = vmatprep.subr.mxu0 0.0
    %519 = vmatpush1.xpose.msra.mxu0 0.0
    %520 = vmatprep.subr.mxu0 0.0
    %521 = vmatpush1.xpose.msra.mxu0 0.0
    %522 = vmatprep.subr.mxu0 0.0
    %523 = vmatpush1.xpose.msra.mxu0 0.0
    %524 = vmatprep.subr.mxu0 0.0
    %525 = vmatpush1.xpose.msra.mxu0 0.0
    %526 = vmatprep.subr.mxu0 0.0
    %527 = vmatpush1.xpose.msra.mxu0 0.0
    %528 = vmatprep.subr.mxu0 0.0
    %529 = vmatpush1.xpose.msra.mxu0 0.0
    %530 = vmatprep.subr.mxu0 0.0
    %531 = vmatpush1.xpose.msra.mxu0 0.0
    %532 = vmatprep.subr.mxu0 0.0
    %533 = vmatpush1.xpose.msra.mxu0 0.0
    %534 = vmatprep.subr.mxu0 0.0
    %535 = vmatpush1.xpose.msra.mxu0 0.0
    %536 = vmatprep.subr.mxu0 0.0
    %537 = vmatpush1.xpose.msra.mxu0 0.0
    %538 = vmatprep.subr.mxu0 0.0
    %539 = vmatpush1.xpose.msra.mxu0 0.0
    %540 = vmatprep.mubr.f32.mxu0 0.0
    %541 = vmatmul.mubr.f32.gmra.mrb[0].mxu0 %v471
    %v542 = vpop.f32.mrb[0].mxu0
    %v543 = vadd.f32 0.0, %v542
    %v544 = vpop.f32.mrb[0].mxu0
    %545 = vmatprep.mubr.f32.mxu0 0.0
    %546 = vmatmul.mubr.f32.gmra.mrb[0].mxu0 %v474
    %v547 = vpop.f32.mrb[0].mxu0
    %v548 = vadd.f32 0.0, %v547
    %v549 = vpop.f32.mrb[0].mxu0
    %550 = vdwg.mxu0
    %v552 = vsel %vm136, %v543, 0
    %v555 = vsel %vm136, %v548, 0
    %557 = vmatprep.subr.mxu0 %v467
    %558 = vmatpush1.msra.mxu0 %v466
    %559 = vmatprep.subr.mxu0 %v469
    %560 = vmatpush1.msra.mxu0 %v468
    %561 = vmatprep.subr.mxu0 0.0
    %562 = vmatpush1.msra.mxu0 0.0
    %563 = vmatprep.subr.mxu0 0.0
    %564 = vmatpush1.msra.mxu0 0.0
    %565 = vmatprep.subr.mxu0 0.0
    %566 = vmatpush1.msra.mxu0 0.0
    %567 = vmatprep.subr.mxu0 0.0
    %568 = vmatpush1.msra.mxu0 0.0
    %569 = vmatprep.subr.mxu0 0.0
    %570 = vmatpush1.msra.mxu0 0.0
    %571 = vmatprep.subr.mxu0 0.0
    %572 = vmatpush1.msra.mxu0 0.0
    %573 = vmatprep.subr.mxu0 0.0
    %574 = vmatpush1.msra.mxu0 0.0
    %575 = vmatprep.subr.mxu0 0.0
    %576 = vmatpush1.msra.mxu0 0.0
    %577 = vmatprep.subr.mxu0 0.0
    %578 = vmatpush1.msra.mxu0 0.0
    %579 = vmatprep.subr.mxu0 0.0
    %580 = vmatpush1.msra.mxu0 0.0
    %581 = vmatprep.subr.mxu0 0.0
    %582 = vmatpush1.msra.mxu0 0.0
    %583 = vmatprep.subr.mxu0 0.0
    %584 = vmatpush1.msra.mxu0 0.0
    %585 = vmatprep.subr.mxu0 0.0
    %586 = vmatpush1.msra.mxu0 0.0
    %587 = vmatprep.subr.mxu0 0.0
    %588 = vmatpush1.msra.mxu0 0.0
    %589 = vmatprep.subr.mxu0 0.0
    %590 = vmatpush1.msra.mxu0 0.0
    %591 = vmatprep.subr.mxu0 0.0
    %592 = vmatpush1.msra.mxu0 0.0
    %593 = vmatprep.subr.mxu0 0.0
    %594 = vmatpush1.msra.mxu0 0.0
    %595 = vmatprep.subr.mxu0 0.0
    %596 = vmatpush1.msra.mxu0 0.0
    %597 = vmatprep.subr.mxu0 0.0
    %598 = vmatpush1.msra.mxu0 0.0
    %599 = vmatprep.subr.mxu0 0.0
    %600 = vmatpush1.msra.mxu0 0.0
    %601 = vmatprep.subr.mxu0 0.0
    %602 = vmatpush1.msra.mxu0 0.0
    %603 = vmatprep.subr.mxu0 0.0
    %604 = vmatpush1.msra.mxu0 0.0
    %605 = vmatprep.subr.mxu0 0.0
    %606 = vmatpush1.msra.mxu0 0.0
    %607 = vmatprep.subr.mxu0 0.0
    %608 = vmatpush1.msra.mxu0 0.0
    %609 = vmatprep.subr.mxu0 0.0
    %610 = vmatpush1.msra.mxu0 0.0
    %611 = vmatprep.subr.mxu0 0.0
    %612 = vmatpush1.msra.mxu0 0.0
    %613 = vmatprep.subr.mxu0 0.0
    %614 = vmatpush1.msra.mxu0 0.0
    %615 = vmatprep.subr.mxu0 0.0
    %616 = vmatpush1.msra.mxu0 0.0
    %617 = vmatprep.subr.mxu0 0.0
    %618 = vmatpush1.msra.mxu0 0.0
    %619 = vmatprep.subr.mxu0 0.0
    %620 = vmatpush1.msra.mxu0 0.0
    %621 = vmatprep.mubr.f32.mxu0 0.0
    %622 = vmatmul.mubr.f32.gmra.mrb[0].mxu0 %v552
    %v623 = vpop.f32.mrb[0].mxu0
    %v624 = vadd.f32 0.0, %v623
    %v625 = vpop.f32.mrb[0].mxu0
    %v626 = vadd.f32 0.0, %v625
    %627 = vmatprep.mubr.f32.mxu0 0.0
    %628 = vmatmul.mubr.f32.gmra.mrb[0].mxu0 %v555
    %v629 = vpop.f32.mrb[0].mxu0
    %v630 = vadd.f32 0.0, %v629
    %v631 = vpop.f32.mrb[0].mxu0
    %v632 = vadd.f32 0.0, %v631
    %633 = vdwg.mxu0
    %v634 = vmul.f32 %v438, %v624
    %v635 = vmul.f32 %v439, %v626
    %v636 = vmul.f32 %v440, %v630
    %v637 = vmul.f32 %v441, %v632
    %v638 = vadd.f32 %v634, %v636
    %v639 = vrot.slane %v638, 4
    %v640 = vadd.f32 %v638, %v639
    %v641 = vrot.slane %v640, 2
    %v642 = vadd.f32 %v640, %v641
    %v643 = vrot.slane %v642, 1
    %v644 = vadd.f32 %v642, %v643
    %v645 = vadd.f32 %v635, %v637
    %v646 = vrot.slane %v645, 4
    %v647 = vadd.f32 %v645, %v646
    %v648 = vrot.slane %v647, 2
    %v649 = vadd.f32 %v647, %v648
    %v650 = vrot.slane %v649, 1
    %v651 = vadd.f32 %v649, %v650
    %v654 = vcombine.low %v644, %v651
    %v656 = vunpack.c.l.s4 1966171168
    %v657 = vunpack.c.0.s8 %v656
    %v658 = vlaneseq
    %v659 = vshrl.u32 %v658, 7
    %v660 = vsub.s32 %v657, %v659
    %v661 = vrot.slane %v654, %v660
    %v663 = vunpack.c.l.s4 1966171168
    %v664 = vunpack.c.0.s8 %v663
    %v665 = vlaneseq
    %v666 = vshrl.u32 %v665, 7
    %v667 = vsub.s32 %v664, %v666
    %v668 = vrot.slane %v661, %v667
    %v670 = vlaneseq
    %vm671 = vcmp.ge.s32.totalorder %v670, 0
    %vm672 = vcmp.lt.s32.totalorder %v670, 256
    %vm673 = vmand %vm671, %vm672
    %674 = vst.msk [vmem:[%s7] sm:$0x3] %vm673, %v668
    // Predicated region
    $region34: #{forward.1} parent=1 // pred_check
      _
    $region35: #{forward.1} parent=1 // pred_check_branch
      %676 = sbr.rel (0) target = $region37
    $region36: #{forward.1} parent=1 // pred_region
      _
    $region37: #{forward.1} parent=1 // pred_fallthru
      _
    // Predicated region
    $region38: #{forward.1} parent=1 // pred_check
      _
    $region39: #{forward.1} parent=1 // pred_check_branch
      %678 = sbr.rel (0) target = $region41
    $region40: #{forward.1} parent=1 // pred_region
      _
    $region41: #{forward.1} parent=1 // pred_fallthru
      _
    %679 = vsyncpa [#allocation3], 1

</llo_original>
